<compile_context>
chip_gen: v6e
topology: v6e:2x2x1
jax: 0.10.0
libtpu: 0.0.40
codegen_flags: <defaults>
</compile_context>

<pallas_src>
import math
import jax
import jax.numpy as jnp
from jax.experimental import pallas as pl
from jax.experimental.pallas import tpu as pltpu


_LANE = 128
_VMEM_BLOCK_BUDGET = 40 * 1024 * 1024   # keep well under v7x's 64 MiB per-TC VMEM
_RESIDENT_H_BUDGET = 16 * 1024 * 1024   # double-buffered resident-H cap
_MIB = 1024 * 1024


def _round_up(x, m):
    return ((x + m - 1) // m) * m


def _pad2d(a, rows, cols):
    r, c = a.shape
    if (r, c) == (rows, cols):
        return a
    return jnp.zeros((rows, cols), a.dtype).at[:r, :c].set(a)


def _pick_dim_tile(dim, max_tile, min_grid=1):
    """Largest multiple of 128 that divides `dim`, is <= max_tile, and (when possible)
    leaves at least `min_grid` grid steps.  `dim` must be a multiple of 128."""
    best = _LANE
    c = 2 * _LANE
    while c <= max_tile and c <= dim:
        if dim % c == 0 and dim // c >= min_grid:
            best = c
        c += _LANE
    return best


def _vmem_limit(block_bytes):
    return int(min(max(block_bytes + 8 * _MIB, 16 * _MIB), 48 * _MIB))


# ---------------------------------------------------------------------------
# Kernels
# ---------------------------------------------------------------------------
def _make_transform_kernel(use_bf16, has_bias):
    cdt = jnp.bfloat16 if use_bf16 else jnp.float32

    def kernel(*refs):
        if has_bias:
            x_ref, w_ref, b_ref, o_ref = refs
        else:
            x_ref, w_ref, o_ref = refs
        k = pl.program_id(2)

        @pl.when(k == 0)
        def _():
            # bias folded into the accumulator init; output block is the accumulator
            if has_bias:
                o_ref[...] = jnp.broadcast_to(b_ref[...], o_ref.shape)
            else:
                o_ref[...] = jnp.zeros_like(o_ref)

        o_ref[...] += jnp.dot(x_ref[...].astype(cdt), w_ref[...].astype(cdt),
                              preferred_element_type=jnp.float32)

    return kernel


def _make_aggregate_kernel(use_bf16, has_bias, h_resident, tk):
    cdt = jnp.bfloat16 if use_bf16 else jnp.float32

    def kernel(*refs):
        if has_bias:
            adj_ref, h_ref, b_ref, o_ref = refs
        else:
            adj_ref, h_ref, o_ref = refs
        k = pl.program_id(1)

        @pl.when(k == 0)
        def _():
            if has_bias:
                o_ref[...] = jnp.broadcast_to(b_ref[...], o_ref.shape)
            else:
                o_ref[...] = jnp.zeros_like(o_ref)

        if h_resident:
            # H lives fully in VMEM (DMA'd once); slice the K chunk in-place.
            h_blk = h_ref[pl.ds(pl.multiple_of(k * tk, _LANE), tk), :]
        else:
            h_blk = h_ref[...]

        # adjacency tile cast to compute dtype right before the MXU (no HBM copy)
        o_ref[...] += jnp.dot(adj_ref[...].astype(cdt), h_blk.astype(cdt),
                              preferred_element_type=jnp.float32)

    return kernel


# ---------------------------------------------------------------------------
# pallas_call wrappers
# ---------------------------------------------------------------------------
def _pallas_transform(x, w, bias2d, use_bf16):
    """out = x @ w (+ bias), all HBM tensors f32, output f32."""
    n_p, in_p = x.shape
    in_p2, f_p = w.shape
    assert in_p == in_p2

    tm = _pick_dim_tile(n_p, 512, min_grid=2)
    tkw = _pick_dim_tile(in_p, 512)
    tf = _pick_dim_tile(f_p, 512)

    has_bias = bias2d is not None
    kernel = _make_transform_kernel(use_bf16, has_bias)

    in_specs = [
        pl.BlockSpec((tm, tkw), lambda i, j, k: (i, k)),    # x row/K tile
        pl.BlockSpec((tkw, tf), lambda i, j, k: (k, j)),    # W K/feature tile
    ]
    args = [x, w]
    if has_bias:
        in_specs.append(pl.BlockSpec((1, tf), lambda i, j, k: (0, j)))
        args.append(bias2d)

    block_bytes = 2 * 4 * (tm * tkw + tkw * tf + tm * tf + (tf if has_bias else 0))
    flops = 2 * n_p * in_p * f_p
    bytes_accessed = 4 * (n_p * in_p * (f_p // tf)      # x re-streamed per feature tile
                          + in_p * f_p * (n_p // tm)    # W re-streamed per row tile
                          + n_p * f_p
                          + (f_p if has_bias else 0))

    return pl.pallas_call(
        kernel,
        out_shape=jax.ShapeDtypeStruct((n_p, f_p), jnp.float32),
        grid_spec=pltpu.PrefetchScalarGridSpec(
            num_scalar_prefetch=0,
            grid=(n_p // tm, f_p // tf, in_p // tkw),
            in_specs=in_specs,
            out_specs=pl.BlockSpec((tm, tf), lambda i, j, k: (i, j)),
        ),
        compiler_params=pltpu.CompilerParams(
            dimension_semantics=("parallel", "parallel", "arbitrary"),
            vmem_limit_bytes=_vmem_limit(block_bytes),
        ),
        cost_estimate=pl.CostEstimate(flops=flops, transcendentals=0,
                                      bytes_accessed=bytes_accessed),
    )(*args)


def _aggregate_vmem_usage(n_p, f_p, tm, tk, h_resident, has_bias, adj_isz):
    adj_b = 2 * tm * tk * adj_isz
    h_b = 2 * (n_p if h_resident else tk) * f_p * 4
    out_b = 2 * tm * f_p * 4
    bias_b = 2 * f_p * 4 if has_bias else 0
    return adj_b + h_b + out_b + bias_b


def _aggregate_tiles(n_p, f_p, has_bias, adj_isz):
    h_resident = 2 * n_p * f_p * 4 <= _RESIDENT_H_BUDGET
    tm = _pick_dim_tile(n_p, 512, min_grid=2)
    tk = _pick_dim_tile(n_p, 1024)
    while (_aggregate_vmem_usage(n_p, f_p, tm, tk, h_resident, has_bias, adj_isz)
           > _VMEM_BLOCK_BUDGET):
        if tk >= tm and tk > _LANE:
            tk = _pick_dim_tile(n_p, tk - _LANE)
        elif tm > _LANE:
            tm = _pick_dim_tile(n_p, tm - _LANE, min_grid=2)
        elif h_resident:
            h_resident = False
        else:
            break
    return tm, tk, h_resident


def _pallas_aggregate(adj, h, bias2d, use_bf16):
    """out = adj @ h (+ bias); adj streamed in its native dtype, h/out f32."""
    n_p = adj.shape[0]
    n_p2, f_p = h.shape
    assert adj.shape == (n_p, n_p) and n_p2 == n_p

    has_bias = bias2d is not None
    adj_isz = adj.dtype.itemsize
    tm, tk, h_resident = _aggregate_tiles(n_p, f_p, has_bias, adj_isz)
    kernel = _make_aggregate_kernel(use_bf16, has_bias, h_resident, tk)

    if h_resident:
        h_spec = pl.BlockSpec((n_p, f_p), lambda i, k: (0, 0))   # DMA'd once, resident
    else:
        h_spec = pl.BlockSpec((tk, f_p), lambda i, k: (k, 0))

    in_specs = [pl.BlockSpec((tm, tk), lambda i, k: (i, k)), h_spec]
    args = [adj, h]
    if has_bias:
        in_specs.append(pl.BlockSpec((1, f_p), lambda i, k: (0, 0)))
        args.append(bias2d)

    usage = _aggregate_vmem_usage(n_p, f_p, tm, tk, h_resident, has_bias, adj_isz)
    h_reads = 1 if h_resident else (n_p // tm)
    flops = 2 * n_p * n_p * f_p
    bytes_accessed = (n_p * n_p * adj_isz
                      + 4 * (h_reads * n_p * f_p + n_p * f_p
                             + (f_p if has_bias else 0)))

    return pl.pallas_call(
        kernel,
        out_shape=jax.ShapeDtypeStruct((n_p, f_p), jnp.float32),
        grid_spec=pltpu.PrefetchScalarGridSpec(
            num_scalar_prefetch=0,
            grid=(n_p // tm, n_p // tk),
            in_specs=in_specs,
            out_specs=pl.BlockSpec((tm, f_p), lambda i, k: (i, 0)),
        ),
        compiler_params=pltpu.CompilerParams(
            dimension_semantics=("parallel", "arbitrary"),
            vmem_limit_bytes=_vmem_limit(usage),
        ),
        cost_estimate=pl.CostEstimate(flops=flops, transcendentals=0,
                                      bytes_accessed=bytes_accessed),
    )(*args)


# ---------------------------------------------------------------------------
# Public entry point (matches GNN_Layer.forward semantics)
# ---------------------------------------------------------------------------
def gnn_layer(x, adj, weight, bias=None, *, use_bf16=True):
    """out = adj @ (x @ weight) + bias  (bias optional)."""
    n, in_f = x.shape
    in_f_w, out_f = weight.shape
    assert in_f == in_f_w and adj.shape == (n, n)

    f32 = jnp.float32
    n_p = _round_up(n, _LANE)       # node dim padded to 128 only
    in_p = _round_up(in_f, _LANE)   # lane-dense feature widths
    out_p = _round_up(out_f, _LANE)

    # Adjacency: keep native float dtype (f32 or a caller-cached bf16); pad only if
    # needed.  No full-matrix cast copy is made in the wrapper.
    if adj.dtype not in (jnp.float32, jnp.bfloat16):
        adj = adj.astype(f32)
    adj_p = _pad2d(adj, n_p, n_p)

    x_p = _pad2d(x.astype(f32), n_p, in_p)
    w_p = _pad2d(weight.astype(f32), in_p, out_p)
    bias_p = None
    if bias is not None:
        bias_p = _pad2d(bias.astype(f32).reshape(1, -1), 1, out_p)

    # Run the O(N^2) aggregation on the narrower (padded) feature width.
    if out_p <= in_p:
        support = _pallas_transform(x_p, w_p, None, use_bf16)            # (n_p, out_p) f32
        out_full = _pallas_aggregate(adj_p, support, bias_p, use_bf16)   # + bias
    else:
        h = _pallas_aggregate(adj_p, x_p, None, use_bf16)                # (n_p, in_p) f32
        out_full = _pallas_transform(h, w_p, bias_p, use_bf16)           # + bias

    return out_full[:n, :out_f]


# ---------------------------------------------------------------------------
# Demo / correctness check
# ---------------------------------------------------------------------------
if __name__ == "__main__":
    N = 64            # number of graph nodes
    IN_FEATURES = 32
    OUT_FEATURES = 16

    key = jax.random.PRNGKey(0)
    k_x, k_adj, k_w, k_b = jax.random.split(key, 4)

    # reset_parameters(): uniform(-stdv, stdv) with stdv = 1/sqrt(out_features)
    stdv = 1.0 / math.sqrt(OUT_FEATURES)
    weight = jax.random.uniform(
        k_w, (IN_FEATURES, OUT_FEATURES), jnp.float32, minval=-stdv, maxval=stdv)
    bias = jax.random.uniform(
        k_b, (OUT_FEATURES,), jnp.float32, minval=-stdv, maxval=stdv)

    # node features + (dense) adjacency with self-loops
    x = jax.random.normal(k_x, (N, IN_FEATURES), jnp.float32)
    adj_raw = (jax.random.uniform(k_adj, (N, N)) < 0.1).astype(jnp.float32)
    adj = adj_raw + jnp.eye(N, dtype=jnp.float32)

    out = jax.jit(gnn_layer)(x, adj, weight, bias)
    out = jax.block_until_ready(out)
    assert out.shape == (N, OUT_FEATURES)

    # Reference matching the kernel's bf16 operand rounding (0/1(+I) adjacency exact).
    xb = x.astype(jnp.bfloat16).astype(jnp.float32)
    wb = weight.astype(jnp.bfloat16).astype(jnp.float32)
    ab = adj.astype(jnp.bfloat16).astype(jnp.float32)
    support_ref = xb @ wb
    ref_bf16 = ab @ support_ref.astype(jnp.bfloat16).astype(jnp.float32) + bias
    assert jnp.allclose(out, ref_bf16, atol=2e-2, rtol=2e-2), "mismatch vs bf16 reference"

    # Looser sanity check against the pure-f32 module semantics.
    ref_f32 = adj @ (x @ weight) + bias
    assert jnp.allclose(out, ref_f32, atol=1e-1, rtol=5e-2), "mismatch vs f32 reference"

    print("KERNEL_OK")
</pallas_src>

<mosaic_0001>
module attributes {stable_mosaic.version = 11 : i64} {
  func.func @kernel(%arg0: i32, %arg1: i32, %arg2: i32, %arg3: memref<128x128xf32, #tpu.memory_space<vmem>>, %arg4: memref<128x128xf32, #tpu.memory_space<vmem>>, %arg5: memref<128x128xf32, #tpu.memory_space<vmem>>) attributes {dimension_semantics = [#tpu.dimension_semantics<parallel>, #tpu.dimension_semantics<parallel>, #tpu.dimension_semantics<arbitrary>], iteration_bounds = array<i64: 1, 1, 1>, scalar_prefetch = 0 : i64, scratch_operands = 0 : i64, tpu.core_type = #tpu.core_type<tc>, window_params = [{transform_indices = @transform_0, window_bounds = array<i64: 128, 128>}, {transform_indices = @transform_1, window_bounds = array<i64: 128, 128>}, {transform_indices = @transform_2, window_bounds = array<i64: 128, 128>}]} {
    %c0_i32 = arith.constant 0 : i32
    %0 = arith.cmpi eq, %arg2, %c0_i32 : i32
    %1 = arith.extui %0 : i1 to i32
    %c0_i32_0 = arith.constant 0 : i32
    %2 = arith.cmpi ne, %1, %c0_i32_0 : i32
    scf.if %2 {
      %cst_8 = arith.constant 0.000000e+00 : f32
      %11 = vector.broadcast %cst_8 : f32 to vector<128x128xf32>
      %c0_9 = arith.constant 0 : index
      %c0_10 = arith.constant 0 : index
      %12 = vector.load %arg5[%c0_9, %c0_10] : memref<128x128xf32, #tpu.memory_space<vmem>>, vector<128x128xf32>
      tpu.vector_store %arg5[%c0_9, %c0_10], %11 {strides = array<i32>} : memref<128x128xf32, #tpu.memory_space<vmem>>, vector<128x128xf32>,
    } else {
    }
    %c0 = arith.constant 0 : index
    %c0_1 = arith.constant 0 : index
    %3 = vector.load %arg5[%c0, %c0_1] : memref<128x128xf32, #tpu.memory_space<vmem>>, vector<128x128xf32>
    %c0_2 = arith.constant 0 : index
    %c0_3 = arith.constant 0 : index
    %4 = vector.load %arg3[%c0_2, %c0_3] : memref<128x128xf32, #tpu.memory_space<vmem>>, vector<128x128xf32>
    %5 = arith.truncf %4 : vector<128x128xf32> to vector<128x128xbf16>
    %c0_4 = arith.constant 0 : index
    %c0_5 = arith.constant 0 : index
    %6 = vector.load %arg4[%c0_4, %c0_5] : memref<128x128xf32, #tpu.memory_space<vmem>>, vector<128x128xf32>
    %7 = arith.truncf %6 : vector<128x128xf32> to vector<128x128xbf16>
    %cst = arith.constant dense<0.000000e+00> : vector<128x128xf32>
    %8 = tpu.matmul %5, %7, %cst {dimension_numbers = #tpu.dot_dimension_numbers<[1], [0], [0], [1], [0, 0, 1, 1], [], []>} : vector<128x128xbf16>, vector<128x128xbf16>, vector<128x128xf32> -> vector<128x128xf32>
    %9 = arith.addf %3, %8 : vector<128x128xf32>
    %c0_6 = arith.constant 0 : index
    %c0_7 = arith.constant 0 : index
    %10 = vector.load %arg5[%c0_6, %c0_7] : memref<128x128xf32, #tpu.memory_space<vmem>>, vector<128x128xf32>
    tpu.vector_store %arg5[%c0_6, %c0_7], %9 {strides = array<i32>} : memref<128x128xf32, #tpu.memory_space<vmem>>, vector<128x128xf32>,
    return
  }
  func.func @transform_0(%arg0: i32, %arg1: i32, %arg2: i32) -> (i32, i32) {
    %c0_i32 = arith.constant 0 : i32
    return %arg0, %arg2 : i32, i32
  }
  func.func @transform_1(%arg0: i32, %arg1: i32, %arg2: i32) -> (i32, i32) {
    %c0_i32 = arith.constant 0 : i32
    return %arg2, %arg1 : i32, i32
  }
  func.func @transform_2(%arg0: i32, %arg1: i32, %arg2: i32) -> (i32, i32) {
    %c0_i32 = arith.constant 0 : i32
    return %arg0, %arg1 : i32, i32
  }
}

module attributes {stable_mosaic.version = 11 : i64} {
  func.func @kernel(%arg0: i32, %arg1: i32, %arg2: memref<128x128xf32, #tpu.memory_space<vmem>>, %arg3: memref<128x128xf32, #tpu.memory_space<vmem>>, %arg4: memref<1x128xf32, #tpu.memory_space<vmem>>, %arg5: memref<128x128xf32, #tpu.memory_space<vmem>>) attributes {dimension_semantics = [#tpu.dimension_semantics<parallel>, #tpu.dimension_semantics<arbitrary>], iteration_bounds = array<i64: 1, 1>, scalar_prefetch = 0 : i64, scratch_operands = 0 : i64, tpu.core_type = #tpu.core_type<tc>, window_params = [{transform_indices = @transform_0, window_bounds = array<i64: 128, 128>}, {pipeline_mode = #tpu.pipeline_mode<synchronous>, transform_indices = @transform_1, window_bounds = array<i64: 128, 128>}, {pipeline_mode = #tpu.pipeline_mode<synchronous>, transform_indices = @transform_2, window_bounds = array<i64: 1, 128>}, {transform_indices = @transform_3, window_bounds = array<i64: 128, 128>}]} {
    %c0_i32 = arith.constant 0 : i32
    %0 = arith.cmpi eq, %arg1, %c0_i32 : i32
    %1 = arith.extui %0 : i1 to i32
    %c0_i32_0 = arith.constant 0 : i32
    %2 = arith.cmpi ne, %1, %c0_i32_0 : i32
    scf.if %2 {
      %c0_7 = arith.constant 0 : index
      %c0_8 = arith.constant 0 : index
      %14 = vector.load %arg4[%c0_7, %c0_8] : memref<1x128xf32, #tpu.memory_space<vmem>>, vector<1x128xf32>
      %15 = vector.shape_cast %14 : vector<1x128xf32> to vector<1x128xf32>
      %16 = vector.broadcast %15 : vector<1x128xf32> to vector<128x128xf32>
      %c0_9 = arith.constant 0 : index
      %c0_10 = arith.constant 0 : index
      %17 = vector.load %arg5[%c0_9, %c0_10] : memref<128x128xf32, #tpu.memory_space<vmem>>, vector<128x128xf32>
      tpu.vector_store %arg5[%c0_9, %c0_10], %16 {strides = array<i32>} : memref<128x128xf32, #tpu.memory_space<vmem>>, vector<128x128xf32>,
    } else {
    }
    %c128_i32 = arith.constant 128 : i32
    %3 = arith.muli %arg1, %c128_i32 : i32
    %4 = tpu.assume_multiple %3, 128 : i32
    %5 = arith.index_cast %4 : i32 to index
    %c0 = arith.constant 0 : index
    %6 = vector.load %arg3[%5, %c0] : memref<128x128xf32, #tpu.memory_space<vmem>>, vector<128x128xf32>
    %c0_1 = arith.constant 0 : index
    %c0_2 = arith.constant 0 : index
    %7 = vector.load %arg5[%c0_1, %c0_2] : memref<128x128xf32, #tpu.memory_space<vmem>>, vector<128x128xf32>
    %c0_3 = arith.constant 0 : index
    %c0_4 = arith.constant 0 : index
    %8 = vector.load %arg2[%c0_3, %c0_4] : memref<128x128xf32, #tpu.memory_space<vmem>>, vector<128x128xf32>
    %9 = arith.truncf %8 : vector<128x128xf32> to vector<128x128xbf16>
    %10 = arith.truncf %6 : vector<128x128xf32> to vector<128x128xbf16>
    %cst = arith.constant dense<0.000000e+00> : vector<128x128xf32>
    %11 = tpu.matmul %9, %10, %cst {dimension_numbers = #tpu.dot_dimension_numbers<[1], [0], [0], [1], [0, 0, 1, 1], [], []>} : vector<128x128xbf16>, vector<128x128xbf16>, vector<128x128xf32> -> vector<128x128xf32>
    %12 = arith.addf %7, %11 : vector<128x128xf32>
    %c0_5 = arith.constant 0 : index
    %c0_6 = arith.constant 0 : index
    %13 = vector.load %arg5[%c0_5, %c0_6] : memref<128x128xf32, #tpu.memory_space<vmem>>, vector<128x128xf32>
    tpu.vector_store %arg5[%c0_5, %c0_6], %12 {strides = array<i32>} : memref<128x128xf32, #tpu.memory_space<vmem>>, vector<128x128xf32>,
    return
  }
  func.func @transform_0(%arg0: i32, %arg1: i32) -> (i32, i32) {
    %c0_i32 = arith.constant 0 : i32
    return %arg0, %arg1 : i32, i32
  }
  func.func @transform_1(%arg0: i32, %arg1: i32) -> (i32, i32) {
    %c0_i32 = arith.constant 0 : i32
    %c0_i32_0 = arith.constant 0 : i32
    %c0_i32_1 = arith.constant 0 : i32
    return %c0_i32, %c0_i32_0 : i32, i32
  }
  func.func @transform_2(%arg0: i32, %arg1: i32) -> (i32, i32) {
    %c0_i32 = arith.constant 0 : i32
    %c0_i32_0 = arith.constant 0 : i32
    %c0_i32_1 = arith.constant 0 : i32
    return %c0_i32, %c0_i32_0 : i32, i32
  }
  func.func @transform_3(%arg0: i32, %arg1: i32) -> (i32, i32) {
    %c0_i32 = arith.constant 0 : i32
    %c0_i32_0 = arith.constant 0 : i32
    return %arg0, %c0_i32 : i32, i32
  }
}

</mosaic_0001>

<llo_original>
// kernel: gnn_layer.2
$region0: #{gnn_layer.2}
  #allocation0 [shape = 'u32[]', space=smem, size = 0x4, offset = 0x4, fixed_abs, tag = 'smem constant byte address 0x4 - core index']
  #allocation1 [shape = 'u32[144,128]{1,0:T(1,128)}', space=vmem, size = 0x12000, scoped, tag = 'internal scratch']
  %s0 = inlined_call_operand.vmem [shape: f32[128,128], index: 0, kind: input, shape index: {}]
  %s1 = inlined_call_operand.vmem [shape: f32[128,128], index: 1, kind: input, shape index: {}]
  %s2 = inlined_call_operand.vmem [shape: f32[128,128], index: 2, kind: output, shape index: {}]
  %s3 = sld [smem:[#allocation0]]
  $region22: #{gnn_layer.2} parent=0
    _
  %s5 = ssub.s32 1, %s3
  %s6 = scalar_select 0, %s5, %s3
  // Predicated region
  $region2: #{gnn_layer.2} parent=0 // pred_check
    _
  $region3: #{gnn_layer.2} parent=0 // pred_check_branch
    %8 = sbr.rel (0) target = $region5
  $region4: #{gnn_layer.2} parent=0 // pred_region
    _
  $region5: #{gnn_layer.2} parent=0 // pred_fallthru
    _
  // Predicated region
  $region6: #{gnn_layer.2} parent=0 // pred_check
    _
  $region7: #{gnn_layer.2} parent=0 // pred_check_branch
    %10 = sbr.rel (0) target = $region9
  $region8: #{gnn_layer.2} parent=0 // pred_region
    _
  $region9: #{gnn_layer.2} parent=0 // pred_fallthru
    _
  %p12 = scmp.eq.s32.totalorder 0, 0
  // Predicated region
  $region10: #{gnn_layer.2} parent=0 // pred_check
    %p13 = pneg %p12
  $region11: #{gnn_layer.2} parent=0 // pred_check_branch
    %15 = sbr.rel (%p13) target = $region13
  $region12: #{gnn_layer.2} parent=0 // pred_region
    %16 = vst [vmem:[%s2] sm:$0xff] 0.0
    %17 = vst [vmem:[%s2 + $0x8] sm:$0xff] 0.0
    %18 = vst [vmem:[%s2 + $0x10] sm:$0xff] 0.0
    %19 = vst [vmem:[%s2 + $0x18] sm:$0xff] 0.0
    %20 = vst [vmem:[%s2 + $0x20] sm:$0xff] 0.0
    %21 = vst [vmem:[%s2 + $0x28] sm:$0xff] 0.0
    %22 = vst [vmem:[%s2 + $0x30] sm:$0xff] 0.0
    %23 = vst [vmem:[%s2 + $0x38] sm:$0xff] 0.0
    %24 = vst [vmem:[%s2 + $0x40] sm:$0xff] 0.0
    %25 = vst [vmem:[%s2 + $0x48] sm:$0xff] 0.0
    %26 = vst [vmem:[%s2 + $0x50] sm:$0xff] 0.0
    %27 = vst [vmem:[%s2 + $0x58] sm:$0xff] 0.0
    %28 = vst [vmem:[%s2 + $0x60] sm:$0xff] 0.0
    %29 = vst [vmem:[%s2 + $0x68] sm:$0xff] 0.0
    %30 = vst [vmem:[%s2 + $0x70] sm:$0xff] 0.0
    %31 = vst [vmem:[%s2 + $0x78] sm:$0xff] 0.0
  $region13: #{gnn_layer.2} parent=0 // pred_fallthru
    _
  %v32 = vld [vmem:[%s2] sm:$0xff]
  %v33 = vld [vmem:[%s2 + $0x8] sm:$0xff]
  %v34 = vld [vmem:[%s2 + $0x10] sm:$0xff]
  %v35 = vld [vmem:[%s2 + $0x18] sm:$0xff]
  %v36 = vld [vmem:[%s2 + $0x20] sm:$0xff]
  %v37 = vld [vmem:[%s2 + $0x28] sm:$0xff]
  %v38 = vld [vmem:[%s2 + $0x30] sm:$0xff]
  %v39 = vld [vmem:[%s2 + $0x38] sm:$0xff]
  %v40 = vld [vmem:[%s2 + $0x40] sm:$0xff]
  %v41 = vld [vmem:[%s2 + $0x48] sm:$0xff]
  %v42 = vld [vmem:[%s2 + $0x50] sm:$0xff]
  %v43 = vld [vmem:[%s2 + $0x58] sm:$0xff]
  %v44 = vld [vmem:[%s2 + $0x60] sm:$0xff]
  %v45 = vld [vmem:[%s2 + $0x68] sm:$0xff]
  %v46 = vld [vmem:[%s2 + $0x70] sm:$0xff]
  %v47 = vld [vmem:[%s2 + $0x78] sm:$0xff]
  %v48 = vld [vmem:[%s0] sm:$0xff]
  %v49 = vld [vmem:[%s0 + $0x8] sm:$0xff]
  %v50 = vld [vmem:[%s0 + $0x10] sm:$0xff]
  %v51 = vld [vmem:[%s0 + $0x18] sm:$0xff]
  %v52 = vld [vmem:[%s0 + $0x20] sm:$0xff]
  %v53 = vld [vmem:[%s0 + $0x28] sm:$0xff]
  %v54 = vld [vmem:[%s0 + $0x30] sm:$0xff]
  %v55 = vld [vmem:[%s0 + $0x38] sm:$0xff]
  %v56 = vld [vmem:[%s0 + $0x40] sm:$0xff]
  %v57 = vld [vmem:[%s0 + $0x48] sm:$0xff]
  %v58 = vld [vmem:[%s0 + $0x50] sm:$0xff]
  %v59 = vld [vmem:[%s0 + $0x58] sm:$0xff]
  %v60 = vld [vmem:[%s0 + $0x60] sm:$0xff]
  %v61 = vld [vmem:[%s0 + $0x68] sm:$0xff]
  %v62 = vld [vmem:[%s0 + $0x70] sm:$0xff]
  %v63 = vld [vmem:[%s0 + $0x78] sm:$0xff]
  %v64 = vpack.c.bf16 %v49, %v48
  %v65 = vpack.c.bf16 %v51, %v50
  %v66 = vpack.c.bf16 %v53, %v52
  %v67 = vpack.c.bf16 %v55, %v54
  %v68 = vpack.c.bf16 %v57, %v56
  %v69 = vpack.c.bf16 %v59, %v58
  %v70 = vpack.c.bf16 %v61, %v60
  %v71 = vpack.c.bf16 %v63, %v62
  %v72 = vld [vmem:[%s1] sm:$0xff]
  %v73 = vld [vmem:[%s1 + $0x8] sm:$0xff]
  %v74 = vld [vmem:[%s1 + $0x10] sm:$0xff]
  %v75 = vld [vmem:[%s1 + $0x18] sm:$0xff]
  %v76 = vld [vmem:[%s1 + $0x20] sm:$0xff]
  %v77 = vld [vmem:[%s1 + $0x28] sm:$0xff]
  %v78 = vld [vmem:[%s1 + $0x30] sm:$0xff]
  %v79 = vld [vmem:[%s1 + $0x38] sm:$0xff]
  %v80 = vld [vmem:[%s1 + $0x40] sm:$0xff]
  %v81 = vld [vmem:[%s1 + $0x48] sm:$0xff]
  %v82 = vld [vmem:[%s1 + $0x50] sm:$0xff]
  %v83 = vld [vmem:[%s1 + $0x58] sm:$0xff]
  %v84 = vld [vmem:[%s1 + $0x60] sm:$0xff]
  %v85 = vld [vmem:[%s1 + $0x68] sm:$0xff]
  %v86 = vld [vmem:[%s1 + $0x70] sm:$0xff]
  %v87 = vld [vmem:[%s1 + $0x78] sm:$0xff]
  %v88 = vpack.c.bf16 %v73, %v72
  %v89 = vpack.c.bf16 %v75, %v74
  %v90 = vpack.c.bf16 %v77, %v76
  %v91 = vpack.c.bf16 %v79, %v78
  %v92 = vpack.c.bf16 %v81, %v80
  %v93 = vpack.c.bf16 %v83, %v82
  %v94 = vpack.c.bf16 %v85, %v84
  %v95 = vpack.c.bf16 %v87, %v86
  %96 = vmatprep.subr.bf16.mxu0 0
  %97 = vmatpush1.bf16.msra.mxu0 %v95
  %98 = vmatprep.subr.bf16.mxu0 0
  %99 = vmatpush1.bf16.msra.mxu0 %v94
  %100 = vmatprep.subr.bf16.mxu0 0
  %101 = vmatpush1.bf16.msra.mxu0 %v93
  %102 = vmatprep.subr.bf16.mxu0 0
  %103 = vmatpush1.bf16.msra.mxu0 %v92
  %104 = vmatprep.subr.bf16.mxu0 0
  %105 = vmatpush1.bf16.msra.mxu0 %v91
  %106 = vmatprep.subr.bf16.mxu0 0
  %107 = vmatpush1.bf16.msra.mxu0 %v90
  %108 = vmatprep.subr.bf16.mxu0 0
  %109 = vmatpush1.bf16.msra.mxu0 %v89
  %110 = vmatprep.subr.bf16.mxu0 0
  %111 = vmatpush1.bf16.msra.mxu0 %v88
  %112 = vmatprep.subr.bf16.mxu0 0
  %113 = vmatpush2.bf16.msra.mxu0 0
  %114 = vmatprep.subr.bf16.mxu0 0
  %115 = vmatpush2.bf16.msra.mxu0 0
  %116 = vmatprep.subr.bf16.mxu0 0
  %117 = vmatpush2.bf16.msra.mxu0 0
  %118 = vmatprep.subr.bf16.mxu0 0
  %119 = vmatpush2.bf16.msra.mxu0 0
  %120 = vmatprep.subr.bf16.mxu0 0
  %121 = vmatpush2.bf16.msra.mxu0 0
  %122 = vmatprep.subr.bf16.mxu0 0
  %123 = vmatpush2.bf16.msra.mxu0 0
  %124 = vmatprep.subr.bf16.mxu0 0
  %125 = vmatpush2.bf16.msra.mxu0 0
  %126 = vmatprep.subr.bf16.mxu0 0
  %127 = vmatpush2.bf16.msra.mxu0 0
  %128 = vmatprep.mubr.bf16.mxu0 0
  %129 = vmatmul.mubr.bf16.gmra.mxu0 %v64
  %v130 = vpop.f32.mrf.mxu0
  %v131 = vadd.f32 0.0, %v130
  %v132 = vpop.f32.mrf.mxu0
  %v133 = vpop.f32.mrf.mxu0
  %v134 = vadd.f32 0.0, %v133
  %v135 = vpop.f32.mrf.mxu0
  %136 = vmatprep.mubr.bf16.mxu0 0
  %137 = vmatmul.mubr.bf16.gmra.mxu0 %v65
  %v138 = vpop.f32.mrf.mxu0
  %v139 = vadd.f32 0.0, %v138
  %v140 = vpop.f32.mrf.mxu0
  %v141 = vpop.f32.mrf.mxu0
  %v142 = vadd.f32 0.0, %v141
  %v143 = vpop.f32.mrf.mxu0
  %144 = vmatprep.mubr.bf16.mxu0 0
  %145 = vmatmul.mubr.bf16.gmra.mxu0 %v66
  %v146 = vpop.f32.mrf.mxu0
  %v147 = vadd.f32 0.0, %v146
  %v148 = vpop.f32.mrf.mxu0
  %v149 = vpop.f32.mrf.mxu0
  %v150 = vadd.f32 0.0, %v149
  %v151 = vpop.f32.mrf.mxu0
  %152 = vmatprep.mubr.bf16.mxu0 0
  %153 = vmatmul.mubr.bf16.gmra.mxu0 %v67
  %v154 = vpop.f32.mrf.mxu0
  %v155 = vadd.f32 0.0, %v154
  %v156 = vpop.f32.mrf.mxu0
  %v157 = vpop.f32.mrf.mxu0
  %v158 = vadd.f32 0.0, %v157
  %v159 = vpop.f32.mrf.mxu0
  %160 = vmatprep.mubr.bf16.mxu0 0
  %161 = vmatmul.mubr.bf16.gmra.mxu0 %v68
  %v162 = vpop.f32.mrf.mxu0
  %v163 = vadd.f32 0.0, %v162
  %v164 = vpop.f32.mrf.mxu0
  %v165 = vpop.f32.mrf.mxu0
  %v166 = vadd.f32 0.0, %v165
  %v167 = vpop.f32.mrf.mxu0
  %168 = vmatprep.mubr.bf16.mxu0 0
  %169 = vmatmul.mubr.bf16.gmra.mxu0 %v69
  %v170 = vpop.f32.mrf.mxu0
  %v171 = vadd.f32 0.0, %v170
  %v172 = vpop.f32.mrf.mxu0
  %v173 = vpop.f32.mrf.mxu0
  %v174 = vadd.f32 0.0, %v173
  %v175 = vpop.f32.mrf.mxu0
  %176 = vmatprep.mubr.bf16.mxu0 0
  %177 = vmatmul.mubr.bf16.gmra.mxu0 %v70
  %v178 = vpop.f32.mrf.mxu0
  %v179 = vadd.f32 0.0, %v178
  %v180 = vpop.f32.mrf.mxu0
  %v181 = vpop.f32.mrf.mxu0
  %v182 = vadd.f32 0.0, %v181
  %v183 = vpop.f32.mrf.mxu0
  %184 = vmatprep.mubr.bf16.mxu0 0
  %185 = vmatmul.mubr.bf16.gmra.mxu0 %v71
  %v186 = vpop.f32.mrf.mxu0
  %v187 = vadd.f32 0.0, %v186
  %v188 = vpop.f32.mrf.mxu0
  %v189 = vpop.f32.mrf.mxu0
  %v190 = vadd.f32 0.0, %v189
  %v191 = vpop.f32.mrf.mxu0
  %192 = vdwg.mxu0
  %v193 = vadd.f32 %v32, %v131
  %v194 = vadd.f32 %v33, %v134
  %v195 = vadd.f32 %v34, %v139
  %v196 = vadd.f32 %v35, %v142
  %v197 = vadd.f32 %v36, %v147
  %v198 = vadd.f32 %v37, %v150
  %v199 = vadd.f32 %v38, %v155
  %v200 = vadd.f32 %v39, %v158
  %v201 = vadd.f32 %v40, %v163
  %v202 = vadd.f32 %v41, %v166
  %v203 = vadd.f32 %v42, %v171
  %v204 = vadd.f32 %v43, %v174
  %v205 = vadd.f32 %v44, %v179
  %v206 = vadd.f32 %v45, %v182
  %v207 = vadd.f32 %v46, %v187
  %v208 = vadd.f32 %v47, %v190
  %209 = vst [vmem:[%s2] sm:$0xff] %v193
  %210 = vst [vmem:[%s2 + $0x8] sm:$0xff] %v194
  %211 = vst [vmem:[%s2 + $0x10] sm:$0xff] %v195
  %212 = vst [vmem:[%s2 + $0x18] sm:$0xff] %v196
  %213 = vst [vmem:[%s2 + $0x20] sm:$0xff] %v197
  %214 = vst [vmem:[%s2 + $0x28] sm:$0xff] %v198
  %215 = vst [vmem:[%s2 + $0x30] sm:$0xff] %v199
  %216 = vst [vmem:[%s2 + $0x38] sm:$0xff] %v200
  %217 = vst [vmem:[%s2 + $0x40] sm:$0xff] %v201
  %218 = vst [vmem:[%s2 + $0x48] sm:$0xff] %v202
  %219 = vst [vmem:[%s2 + $0x50] sm:$0xff] %v203
  %220 = vst [vmem:[%s2 + $0x58] sm:$0xff] %v204
  %221 = vst [vmem:[%s2 + $0x60] sm:$0xff] %v205
  %222 = vst [vmem:[%s2 + $0x68] sm:$0xff] %v206
  %223 = vst [vmem:[%s2 + $0x70] sm:$0xff] %v207
  %224 = vst [vmem:[%s2 + $0x78] sm:$0xff] %v208
  // Predicated region
  $region14: #{gnn_layer.2} parent=0 // pred_check
    _
  $region15: #{gnn_layer.2} parent=0 // pred_check_branch
    %226 = sbr.rel (0) target = $region17
  $region16: #{gnn_layer.2} parent=0 // pred_region
    _
  $region17: #{gnn_layer.2} parent=0 // pred_fallthru
    _
  // Predicated region
  $region18: #{gnn_layer.2} parent=0 // pred_check
    _
  $region19: #{gnn_layer.2} parent=0 // pred_check_branch
    %228 = sbr.rel (0) target = $region21
  $region20: #{gnn_layer.2} parent=0 // pred_region
    _
  $region21: #{gnn_layer.2} parent=0 // pred_fallthru
    _

// kernel: gnn_layer.3
$region0: #{gnn_layer.3}
  #allocation0 [shape = 'u32[]', space=smem, size = 0x4, offset = 0x4, fixed_abs, tag = 'smem constant byte address 0x4 - core index']
  #allocation1 [shape = 'u32[144,128]{1,0:T(1,128)}', space=vmem, size = 0x12000, scoped, tag = 'internal scratch']
  %s0 = inlined_call_operand.vmem [shape: f32[128,128], index: 0, kind: input, shape index: {}]
  %s1 = inlined_call_operand.vmem [shape: f32[128,128], index: 1, kind: input, shape index: {}]
  %s2 = inlined_call_operand.vmem [shape: f32[1,128], index: 2, kind: input, shape index: {}]
  %s3 = inlined_call_operand.vmem [shape: f32[128,128], index: 3, kind: output, shape index: {}]
  %s4 = sld [smem:[#allocation0]]
  $region26: #{gnn_layer.3} parent=0
    _
  %s6 = ssub.s32 1, %s4
  %s7 = scalar_select 0, %s6, %s4
  // Predicated region
  $region2: #{gnn_layer.3} parent=0 // pred_check
    _
  $region3: #{gnn_layer.3} parent=0 // pred_check_branch
    %9 = sbr.rel (0) target = $region5
  $region4: #{gnn_layer.3} parent=0 // pred_region
    _
  $region5: #{gnn_layer.3} parent=0 // pred_fallthru
    _
  // Predicated region
  $region6: #{gnn_layer.3} parent=0 // pred_check
    _
  $region7: #{gnn_layer.3} parent=0 // pred_check_branch
    %11 = sbr.rel (0) target = $region9
  $region8: #{gnn_layer.3} parent=0 // pred_region
    _
  $region9: #{gnn_layer.3} parent=0 // pred_fallthru
    _
  // Predicated region
  $region10: #{gnn_layer.3} parent=0 // pred_check
    _
  $region11: #{gnn_layer.3} parent=0 // pred_check_branch
    %13 = sbr.rel (0) target = $region13
  $region12: #{gnn_layer.3} parent=0 // pred_region
    _
  $region13: #{gnn_layer.3} parent=0 // pred_fallthru
    _
  %p15 = scmp.eq.s32.totalorder 0, 0
  // Predicated region
  $region14: #{gnn_layer.3} parent=0 // pred_check
    %p16 = pneg %p15
  $region15: #{gnn_layer.3} parent=0 // pred_check_branch
    %18 = sbr.rel (%p16) target = $region17
  $region16: #{gnn_layer.3} parent=0 // pred_region
    %v19 = vld [vmem:[%s2] sm:$0x1]
    %v21 = vlaneseq
    %v22 = vshrl.u32 %v21, 7
    %v23 = vsub.s32 0, %v22
    %v24 = vrot.slane %v19, %v23
    %26 = vst [vmem:[%s3] sm:$0xff] %v24
    %27 = vst [vmem:[%s3 + $0x8] sm:$0xff] %v24
    %28 = vst [vmem:[%s3 + $0x10] sm:$0xff] %v24
    %29 = vst [vmem:[%s3 + $0x18] sm:$0xff] %v24
    %30 = vst [vmem:[%s3 + $0x20] sm:$0xff] %v24
    %31 = vst [vmem:[%s3 + $0x28] sm:$0xff] %v24
    %32 = vst [vmem:[%s3 + $0x30] sm:$0xff] %v24
    %33 = vst [vmem:[%s3 + $0x38] sm:$0xff] %v24
    %34 = vst [vmem:[%s3 + $0x40] sm:$0xff] %v24
    %35 = vst [vmem:[%s3 + $0x48] sm:$0xff] %v24
    %36 = vst [vmem:[%s3 + $0x50] sm:$0xff] %v24
    %37 = vst [vmem:[%s3 + $0x58] sm:$0xff] %v24
    %38 = vst [vmem:[%s3 + $0x60] sm:$0xff] %v24
    %39 = vst [vmem:[%s3 + $0x68] sm:$0xff] %v24
    %40 = vst [vmem:[%s3 + $0x70] sm:$0xff] %v24
    %41 = vst [vmem:[%s3 + $0x78] sm:$0xff] %v24
  $region17: #{gnn_layer.3} parent=0 // pred_fallthru
    _
  %s42 = smul.u32 0, 128
  %s43 = scalar_lea.vmem %s1, %s42
  %v44 = vld [vmem:[%s43] sm:$0xff]
  %v45 = vld [vmem:[%s43 + $0x8] sm:$0xff]
  %v46 = vld [vmem:[%s43 + $0x10] sm:$0xff]
  %v47 = vld [vmem:[%s43 + $0x18] sm:$0xff]
  %v48 = vld [vmem:[%s43 + $0x20] sm:$0xff]
  %v49 = vld [vmem:[%s43 + $0x28] sm:$0xff]
  %v50 = vld [vmem:[%s43 + $0x30] sm:$0xff]
  %v51 = vld [vmem:[%s43 + $0x38] sm:$0xff]
  %v52 = vld [vmem:[%s43 + $0x40] sm:$0xff]
  %v53 = vld [vmem:[%s43 + $0x48] sm:$0xff]
  %v54 = vld [vmem:[%s43 + $0x50] sm:$0xff]
  %v55 = vld [vmem:[%s43 + $0x58] sm:$0xff]
  %v56 = vld [vmem:[%s43 + $0x60] sm:$0xff]
  %v57 = vld [vmem:[%s43 + $0x68] sm:$0xff]
  %v58 = vld [vmem:[%s43 + $0x70] sm:$0xff]
  %v59 = vld [vmem:[%s43 + $0x78] sm:$0xff]
  %v60 = vld [vmem:[%s3] sm:$0xff]
  %v61 = vld [vmem:[%s3 + $0x8] sm:$0xff]
  %v62 = vld [vmem:[%s3 + $0x10] sm:$0xff]
  %v63 = vld [vmem:[%s3 + $0x18] sm:$0xff]
  %v64 = vld [vmem:[%s3 + $0x20] sm:$0xff]
  %v65 = vld [vmem:[%s3 + $0x28] sm:$0xff]
  %v66 = vld [vmem:[%s3 + $0x30] sm:$0xff]
  %v67 = vld [vmem:[%s3 + $0x38] sm:$0xff]
  %v68 = vld [vmem:[%s3 + $0x40] sm:$0xff]
  %v69 = vld [vmem:[%s3 + $0x48] sm:$0xff]
  %v70 = vld [vmem:[%s3 + $0x50] sm:$0xff]
  %v71 = vld [vmem:[%s3 + $0x58] sm:$0xff]
  %v72 = vld [vmem:[%s3 + $0x60] sm:$0xff]
  %v73 = vld [vmem:[%s3 + $0x68] sm:$0xff]
  %v74 = vld [vmem:[%s3 + $0x70] sm:$0xff]
  %v75 = vld [vmem:[%s3 + $0x78] sm:$0xff]
  %v76 = vld [vmem:[%s0] sm:$0xff]
  %v77 = vld [vmem:[%s0 + $0x8] sm:$0xff]
  %v78 = vld [vmem:[%s0 + $0x10] sm:$0xff]
  %v79 = vld [vmem:[%s0 + $0x18] sm:$0xff]
  %v80 = vld [vmem:[%s0 + $0x20] sm:$0xff]
  %v81 = vld [vmem:[%s0 + $0x28] sm:$0xff]
  %v82 = vld [vmem:[%s0 + $0x30] sm:$0xff]
  %v83 = vld [vmem:[%s0 + $0x38] sm:$0xff]
  %v84 = vld [vmem:[%s0 + $0x40] sm:$0xff]
  %v85 = vld [vmem:[%s0 + $0x48] sm:$0xff]
  %v86 = vld [vmem:[%s0 + $0x50] sm:$0xff]
  %v87 = vld [vmem:[%s0 + $0x58] sm:$0xff]
  %v88 = vld [vmem:[%s0 + $0x60] sm:$0xff]
  %v89 = vld [vmem:[%s0 + $0x68] sm:$0xff]
  %v90 = vld [vmem:[%s0 + $0x70] sm:$0xff]
  %v91 = vld [vmem:[%s0 + $0x78] sm:$0xff]
  %v92 = vpack.c.bf16 %v77, %v76
  %v93 = vpack.c.bf16 %v79, %v78
  %v94 = vpack.c.bf16 %v81, %v80
  %v95 = vpack.c.bf16 %v83, %v82
  %v96 = vpack.c.bf16 %v85, %v84
  %v97 = vpack.c.bf16 %v87, %v86
  %v98 = vpack.c.bf16 %v89, %v88
  %v99 = vpack.c.bf16 %v91, %v90
  %v100 = vpack.c.bf16 %v45, %v44
  %v101 = vpack.c.bf16 %v47, %v46
  %v102 = vpack.c.bf16 %v49, %v48
  %v103 = vpack.c.bf16 %v51, %v50
  %v104 = vpack.c.bf16 %v53, %v52
  %v105 = vpack.c.bf16 %v55, %v54
  %v106 = vpack.c.bf16 %v57, %v56
  %v107 = vpack.c.bf16 %v59, %v58
  %108 = vmatprep.subr.bf16.mxu0 0
  %109 = vmatpush1.bf16.msra.mxu0 %v107
  %110 = vmatprep.subr.bf16.mxu0 0
  %111 = vmatpush1.bf16.msra.mxu0 %v106
  %112 = vmatprep.subr.bf16.mxu0 0
  %113 = vmatpush1.bf16.msra.mxu0 %v105
  %114 = vmatprep.subr.bf16.mxu0 0
  %115 = vmatpush1.bf16.msra.mxu0 %v104
  %116 = vmatprep.subr.bf16.mxu0 0
  %117 = vmatpush1.bf16.msra.mxu0 %v103
  %118 = vmatprep.subr.bf16.mxu0 0
  %119 = vmatpush1.bf16.msra.mxu0 %v102
  %120 = vmatprep.subr.bf16.mxu0 0
  %121 = vmatpush1.bf16.msra.mxu0 %v101
  %122 = vmatprep.subr.bf16.mxu0 0
  %123 = vmatpush1.bf16.msra.mxu0 %v100
  %124 = vmatprep.subr.bf16.mxu0 0
  %125 = vmatpush2.bf16.msra.mxu0 0
  %126 = vmatprep.subr.bf16.mxu0 0
  %127 = vmatpush2.bf16.msra.mxu0 0
  %128 = vmatprep.subr.bf16.mxu0 0
  %129 = vmatpush2.bf16.msra.mxu0 0
  %130 = vmatprep.subr.bf16.mxu0 0
  %131 = vmatpush2.bf16.msra.mxu0 0
  %132 = vmatprep.subr.bf16.mxu0 0
  %133 = vmatpush2.bf16.msra.mxu0 0
  %134 = vmatprep.subr.bf16.mxu0 0
  %135 = vmatpush2.bf16.msra.mxu0 0
  %136 = vmatprep.subr.bf16.mxu0 0
  %137 = vmatpush2.bf16.msra.mxu0 0
  %138 = vmatprep.subr.bf16.mxu0 0
  %139 = vmatpush2.bf16.msra.mxu0 0
  %140 = vmatprep.mubr.bf16.mxu0 0
  %141 = vmatmul.mubr.bf16.gmra.mxu0 %v92
  %v142 = vpop.f32.mrf.mxu0
  %v143 = vadd.f32 0.0, %v142
  %v144 = vpop.f32.mrf.mxu0
  %v145 = vpop.f32.mrf.mxu0
  %v146 = vadd.f32 0.0, %v145
  %v147 = vpop.f32.mrf.mxu0
  %148 = vmatprep.mubr.bf16.mxu0 0
  %149 = vmatmul.mubr.bf16.gmra.mxu0 %v93
  %v150 = vpop.f32.mrf.mxu0
  %v151 = vadd.f32 0.0, %v150
  %v152 = vpop.f32.mrf.mxu0
  %v153 = vpop.f32.mrf.mxu0
  %v154 = vadd.f32 0.0, %v153
  %v155 = vpop.f32.mrf.mxu0
  %156 = vmatprep.mubr.bf16.mxu0 0
  %157 = vmatmul.mubr.bf16.gmra.mxu0 %v94
  %v158 = vpop.f32.mrf.mxu0
  %v159 = vadd.f32 0.0, %v158
  %v160 = vpop.f32.mrf.mxu0
  %v161 = vpop.f32.mrf.mxu0
  %v162 = vadd.f32 0.0, %v161
  %v163 = vpop.f32.mrf.mxu0
  %164 = vmatprep.mubr.bf16.mxu0 0
  %165 = vmatmul.mubr.bf16.gmra.mxu0 %v95
  %v166 = vpop.f32.mrf.mxu0
  %v167 = vadd.f32 0.0, %v166
  %v168 = vpop.f32.mrf.mxu0
  %v169 = vpop.f32.mrf.mxu0
  %v170 = vadd.f32 0.0, %v169
  %v171 = vpop.f32.mrf.mxu0
  %172 = vmatprep.mubr.bf16.mxu0 0
  %173 = vmatmul.mubr.bf16.gmra.mxu0 %v96
  %v174 = vpop.f32.mrf.mxu0
  %v175 = vadd.f32 0.0, %v174
  %v176 = vpop.f32.mrf.mxu0
  %v177 = vpop.f32.mrf.mxu0
  %v178 = vadd.f32 0.0, %v177
  %v179 = vpop.f32.mrf.mxu0
  %180 = vmatprep.mubr.bf16.mxu0 0
  %181 = vmatmul.mubr.bf16.gmra.mxu0 %v97
  %v182 = vpop.f32.mrf.mxu0
  %v183 = vadd.f32 0.0, %v182
  %v184 = vpop.f32.mrf.mxu0
  %v185 = vpop.f32.mrf.mxu0
  %v186 = vadd.f32 0.0, %v185
  %v187 = vpop.f32.mrf.mxu0
  %188 = vmatprep.mubr.bf16.mxu0 0
  %189 = vmatmul.mubr.bf16.gmra.mxu0 %v98
  %v190 = vpop.f32.mrf.mxu0
  %v191 = vadd.f32 0.0, %v190
  %v192 = vpop.f32.mrf.mxu0
  %v193 = vpop.f32.mrf.mxu0
  %v194 = vadd.f32 0.0, %v193
  %v195 = vpop.f32.mrf.mxu0
  %196 = vmatprep.mubr.bf16.mxu0 0
  %197 = vmatmul.mubr.bf16.gmra.mxu0 %v99
  %v198 = vpop.f32.mrf.mxu0
  %v199 = vadd.f32 0.0, %v198
  %v200 = vpop.f32.mrf.mxu0
  %v201 = vpop.f32.mrf.mxu0
  %v202 = vadd.f32 0.0, %v201
  %v203 = vpop.f32.mrf.mxu0
  %204 = vdwg.mxu0
  %v205 = vadd.f32 %v60, %v143
  %v206 = vadd.f32 %v61, %v146
  %v207 = vadd.f32 %v62, %v151
  %v208 = vadd.f32 %v63, %v154
  %v209 = vadd.f32 %v64, %v159
  %v210 = vadd.f32 %v65, %v162
  %v211 = vadd.f32 %v66, %v167
  %v212 = vadd.f32 %v67, %v170
  %v213 = vadd.f32 %v68, %v175
  %v214 = vadd.f32 %v69, %v178
  %v215 = vadd.f32 %v70, %v183
  %v216 = vadd.f32 %v71, %v186
  %v217 = vadd.f32 %v72, %v191
  %v218 = vadd.f32 %v73, %v194
  %v219 = vadd.f32 %v74, %v199
  %v220 = vadd.f32 %v75, %v202
  %221 = vst [vmem:[%s3] sm:$0xff] %v205
  %222 = vst [vmem:[%s3 + $0x8] sm:$0xff] %v206
  %223 = vst [vmem:[%s3 + $0x10] sm:$0xff] %v207
  %224 = vst [vmem:[%s3 + $0x18] sm:$0xff] %v208
  %225 = vst [vmem:[%s3 + $0x20] sm:$0xff] %v209
  %226 = vst [vmem:[%s3 + $0x28] sm:$0xff] %v210
  %227 = vst [vmem:[%s3 + $0x30] sm:$0xff] %v211
  %228 = vst [vmem:[%s3 + $0x38] sm:$0xff] %v212
  %229 = vst [vmem:[%s3 + $0x40] sm:$0xff] %v213
  %230 = vst [vmem:[%s3 + $0x48] sm:$0xff] %v214
  %231 = vst [vmem:[%s3 + $0x50] sm:$0xff] %v215
  %232 = vst [vmem:[%s3 + $0x58] sm:$0xff] %v216
  %233 = vst [vmem:[%s3 + $0x60] sm:$0xff] %v217
  %234 = vst [vmem:[%s3 + $0x68] sm:$0xff] %v218
  %235 = vst [vmem:[%s3 + $0x70] sm:$0xff] %v219
  %236 = vst [vmem:[%s3 + $0x78] sm:$0xff] %v220
  // Predicated region
  $region18: #{gnn_layer.3} parent=0 // pred_check
    _
  $region19: #{gnn_layer.3} parent=0 // pred_check_branch
    %238 = sbr.rel (0) target = $region21
  $region20: #{gnn_layer.3} parent=0 // pred_region
    _
  $region21: #{gnn_layer.3} parent=0 // pred_fallthru
    _
  // Predicated region
  $region22: #{gnn_layer.3} parent=0 // pred_check
    _
  $region23: #{gnn_layer.3} parent=0 // pred_check_branch
    %240 = sbr.rel (0) target = $region25
  $region24: #{gnn_layer.3} parent=0 // pred_region
    _
  $region25: #{gnn_layer.3} parent=0 // pred_fallthru
    _

</llo_original>
